<compile_context>
chip_gen: v5e
topology: v5e:2x2
jax: 0.10.0
libtpu: 0.0.40
codegen_flags: <defaults>
</compile_context>

<pallas_src>
import math
from functools import partial

import jax
import jax.numpy as jnp
from jax import lax
from jax.experimental import pallas as pl
from jax.experimental.pallas import tpu as pltpu


# Conservative scoped-VMEM cap: safe on v5e (16 MiB default), v6e and v7x (64 MiB physical).
VMEM_LIMIT_BYTES = 32 * 1024 * 1024


def _pick_tile(dim, candidates):
    """Largest candidate tile that evenly divides `dim`; else the full dim (always legal)."""
    for c in candidates:
        if dim >= c and dim % c == 0:
            return c
    return dim


# ----------------------------- Tiled linear: y = x @ w.T + b -----------------------------

def _linear_kernel(x_ref, w_ref, b_ref, o_ref, acc_ref):
    # x: (tm, tk), w: (tn, tk) (PyTorch layout; contract last dims), b: (1, tn), o: (tm, tn)
    kk = pl.program_id(2)

    @pl.when(kk == 0)
    def _():
        acc_ref[...] = jnp.zeros_like(acc_ref)

    acc_ref[...] += lax.dot_general(
        x_ref[...], w_ref[...], (((1,), (1,)), ((), ())),
        preferred_element_type=jnp.float32)

    @pl.when(kk == pl.num_programs(2) - 1)
    def _():
        o_ref[...] = (acc_ref[...] + b_ref[...]).astype(o_ref.dtype)


def linear(x, w, b):
    """PyTorch nn.Linear semantics.  x: (M, K), w: (N, K), b: (N,)  ->  (M, N)."""
    M, K = x.shape
    N = w.shape[0]
    tm = _pick_tile(M, (256, 128, 64, 32, 16, 8))
    tn = _pick_tile(N, (256, 128))          # lane dim of the output block
    tk = _pick_tile(K, (512, 256, 128))     # lane dim of the x / w blocks
    grid = (M // tm, N // tn, K // tk)

    cost = pl.CostEstimate(
        flops=2 * M * N * K, transcendentals=0,
        bytes_accessed=4 * (M * K + N * K + M * N + N))

    return pl.pallas_call(
        _linear_kernel,
        out_shape=jax.ShapeDtypeStruct((M, N), x.dtype),
        grid=grid,
        in_specs=[
            pl.BlockSpec((tm, tk), lambda i, j, k: (i, k)),
            pl.BlockSpec((tn, tk), lambda i, j, k: (j, k)),
            pl.BlockSpec((1, tn), lambda i, j, k: (0, j)),
        ],
        out_specs=pl.BlockSpec((tm, tn), lambda i, j, k: (i, j)),
        scratch_shapes=[pltpu.VMEM((tm, tn), jnp.float32)],
        compiler_params=pltpu.CompilerParams(
            dimension_semantics=("parallel", "parallel", "arbitrary"),
            vmem_limit_bytes=VMEM_LIMIT_BYTES),
        cost_estimate=cost,
    )(x, w, b.reshape(1, N))


# --------------------- Fused Q/K/V projection (shared X, self-attention) ---------------------

def _qkv_fused_kernel(x_ref, wq_ref, wk_ref, wv_ref, bq_ref, bk_ref, bv_ref,
                      q_ref, k_ref, v_ref, accq, acck, accv):
    kk = pl.program_id(2)

    @pl.when(kk == 0)
    def _():
        accq[...] = jnp.zeros_like(accq)
        acck[...] = jnp.zeros_like(acck)
        accv[...] = jnp.zeros_like(accv)

    x = x_ref[...]
    dn = (((1,), (1,)), ((), ()))   # contract last dims: (tm, tk) x (tn, tk) -> (tm, tn)
    accq[...] += lax.dot_general(x, wq_ref[...], dn, preferred_element_type=jnp.float32)
    acck[...] += lax.dot_general(x, wk_ref[...], dn, preferred_element_type=jnp.float32)
    accv[...] += lax.dot_general(x, wv_ref[...], dn, preferred_element_type=jnp.float32)

    @pl.when(kk == pl.num_programs(2) - 1)
    def _():
        q_ref[...] = (accq[...] + bq_ref[...]).astype(q_ref.dtype)
        k_ref[...] = (acck[...] + bk_ref[...]).astype(k_ref.dtype)
        v_ref[...] = (accv[...] + bv_ref[...]).astype(v_ref.dtype)


def fused_qkv_linear(x, wq, bq, wk, bk, wv, bv):
    """Three nn.Linear projections sharing one X: returns (q, k, v), each (M, N)."""
    M, K = x.shape
    N = wq.shape[0]
    tm = _pick_tile(M, (256, 128, 64, 32, 16, 8))
    tn = _pick_tile(N, (256, 128))
    tk = _pick_tile(K, (512, 256, 128))
    grid = (M // tm, N // tn, K // tk)

    x_spec = pl.BlockSpec((tm, tk), lambda i, j, k: (i, k))
    w_spec = pl.BlockSpec((tn, tk), lambda i, j, k: (j, k))
    b_spec = pl.BlockSpec((1, tn), lambda i, j, k: (0, j))
    o_spec = pl.BlockSpec((tm, tn), lambda i, j, k: (i, j))
    out_sd = jax.ShapeDtypeStruct((M, N), x.dtype)

    cost = pl.CostEstimate(
        flops=3 * 2 * M * N * K, transcendentals=0,
        bytes_accessed=4 * (M * K + 3 * N * K + 3 * M * N + 3 * N))

    return pl.pallas_call(
        _qkv_fused_kernel,
        out_shape=(out_sd, out_sd, out_sd),
        grid=grid,
        in_specs=[x_spec, w_spec, w_spec, w_spec, b_spec, b_spec, b_spec],
        out_specs=(o_spec, o_spec, o_spec),
        scratch_shapes=[pltpu.VMEM((tm, tn), jnp.float32)] * 3,
        compiler_params=pltpu.CompilerParams(
            dimension_semantics=("parallel", "parallel", "arbitrary"),
            vmem_limit_bytes=VMEM_LIMIT_BYTES),
        cost_estimate=cost,
    )(x, wq, wk, wv, bq.reshape(1, N), bk.reshape(1, N), bv.reshape(1, N))


# --------------------- Flash-style scaled dot-product attention ---------------------

def _flash_attn_kernel(q_ref, k_ref, v_ref, o_ref, m_sc, l_sc, acc_sc, *, scale):
    ki = pl.program_id(2)

    @pl.when(ki == 0)
    def _():
        m_sc[...] = jnp.full_like(m_sc, -jnp.inf)
        l_sc[...] = jnp.zeros_like(l_sc)
        acc_sc[...] = jnp.zeros_like(acc_sc)

    # Fold 1/sqrt(D) into the small (H, tq, D) q tile instead of the (H, tq, tkv) scores.
    q = q_ref[...].astype(jnp.float32) * scale                      # (H, tq, D)
    s = jnp.einsum("hqd,hkd->hqk", q, k_ref[...],
                   preferred_element_type=jnp.float32)              # (H, tq, tkv)

    m_prev = m_sc[...]
    m_new = jnp.maximum(m_prev, jnp.max(s, axis=-1, keepdims=True))
    alpha = jnp.exp(m_prev - m_new)
    p = jnp.exp(s - m_new)
    l_sc[...] = alpha * l_sc[...] + jnp.sum(p, axis=-1, keepdims=True)
    acc_sc[...] = alpha * acc_sc[...] + jnp.einsum(
        "hqk,hkd->hqd", p.astype(v_ref.dtype), v_ref[...],
        preferred_element_type=jnp.float32)
    m_sc[...] = m_new

    @pl.when(ki == pl.num_programs(2) - 1)
    def _():
        inv_l = pl.reciprocal(l_sc[...], approx=False)   # exact: keeps the 1e-5 check tight
        o_ref[...] = (acc_sc[...] * inv_l).astype(o_ref.dtype)


def flash_attention(q, k, v):
    """q, k, v: (B, H, S, D) -> (B, H, S, D), softmax(q k^T / sqrt(D)) @ v."""
    B, H, S, D = q.shape
    scale = 1.0 / math.sqrt(D)
    tq = _pick_tile(S, (256, 128))
    tkv = _pick_tile(S, (512, 256, 128))
    grid = (B, S // tq, S // tkv)

    q_spec = pl.BlockSpec((pl.Squeezed(), H, tq, D), lambda b, qi, ki: (b, 0, qi, 0))
    kv_spec = pl.BlockSpec((pl.Squeezed(), H, tkv, D), lambda b, qi, ki: (b, 0, ki, 0))
    o_spec = pl.BlockSpec((pl.Squeezed(), H, tq, D), lambda b, qi, ki: (b, 0, qi, 0))

    cost = pl.CostEstimate(
        flops=2 * 2 * B * H * S * S * D,
        transcendentals=B * H * S * S,
        bytes_accessed=4 * 4 * B * H * S * D)

    return pl.pallas_call(
        partial(_flash_attn_kernel, scale=scale),
        out_shape=jax.ShapeDtypeStruct((B, H, S, D), q.dtype),
        grid=grid,
        in_specs=[q_spec, kv_spec, kv_spec],
        out_specs=o_spec,
        scratch_shapes=[
            pltpu.VMEM((H, tq, 1), jnp.float32),   # running max
            pltpu.VMEM((H, tq, 1), jnp.float32),   # running sum
            pltpu.VMEM((H, tq, D), jnp.float32),   # output accumulator
        ],
        compiler_params=pltpu.CompilerParams(
            dimension_semantics=("parallel", "parallel", "arbitrary"),
            vmem_limit_bytes=VMEM_LIMIT_BYTES),
        cost_estimate=cost,
    )(q, k, v)


# ------------------------------- Module glue ---------------------------------

def multi_headed_attention(params, queries, keys, values, num_heads):
    B, S, H = queries.shape
    D = H // num_heads

    xq = queries.reshape(B * S, H)
    if (queries is keys) and (queries is values):
        # Self-attention: one fused pallas_call — each X tile is read from HBM once
        # and drives all three projections.
        q2, k2, v2 = fused_qkv_linear(
            xq, params["wq"], params["bq"], params["wk"], params["bk"],
            params["wv"], params["bv"])
    else:
        q2 = linear(xq, params["wq"], params["bq"])
        k2 = linear(keys.reshape(B * S, H), params["wk"], params["bk"])
        v2 = linear(values.reshape(B * S, H), params["wv"], params["bv"])

    def split_heads(y):                      # (B*S, H) -> (B, num_heads, S, D)
        return jnp.transpose(y.reshape(B, S, num_heads, D), (0, 2, 1, 3))

    x = flash_attention(split_heads(q2), split_heads(k2), split_heads(v2))
    # dropout_prob = 0.0 -> identity dropout.
    x = jnp.transpose(x, (0, 2, 1, 3)).reshape(B * S, H)   # merge heads back
    out = linear(x, params["wo"], params["bo"])
    return out.reshape(B, S, H)


def init_params(key, hidden_dim):
    # Deterministic synthetic init matching nn.Linear(hidden_dim, hidden_dim) shapes.
    ks = jax.random.split(key, 8)
    bound = 1.0 / math.sqrt(hidden_dim)

    def u(k, shape):
        return jax.random.uniform(k, shape, jnp.float32, -bound, bound)

    return {
        "wq": u(ks[0], (hidden_dim, hidden_dim)), "bq": u(ks[1], (hidden_dim,)),
        "wk": u(ks[2], (hidden_dim, hidden_dim)), "bk": u(ks[3], (hidden_dim,)),
        "wv": u(ks[4], (hidden_dim, hidden_dim)), "bv": u(ks[5], (hidden_dim,)),
        "wo": u(ks[6], (hidden_dim, hidden_dim)), "bo": u(ks[7], (hidden_dim,)),
    }


# ------------------------------- Self-test ------------------------------------

def _ref_forward(p, q, k, v, num_heads):
    def ref_linear(x, w, b):
        return x @ w.T + b

    def ref_split(x):
        B, S, H = x.shape
        return jnp.transpose(x.reshape(B, S, num_heads, H // num_heads), (0, 2, 1, 3))

    qp = ref_split(ref_linear(q, p["wq"], p["bq"]))
    kp = ref_split(ref_linear(k, p["wk"], p["bk"]))
    vp = ref_split(ref_linear(v, p["wv"], p["bv"]))
    d = qp.shape[-1]
    scores = jnp.einsum("bhqd,bhkd->bhqk", qp, kp) / math.sqrt(d)
    w = jax.nn.softmax(scores, axis=-1)
    x = jnp.einsum("bhqk,bhkd->bhqd", w, vp)
    B, H_, S, D = x.shape
    x = jnp.transpose(x, (0, 2, 1, 3)).reshape(B, S, H_ * D)
    return ref_linear(x, p["wo"], p["bo"])


if __name__ == "__main__":
    B, S, H, NUM_HEADS = 2, 8, 32, 2

    key = jax.random.PRNGKey(0)
    kp, kq, kk, kv = jax.random.split(key, 4)
    params = init_params(kp, H)
    queries = jax.random.normal(kq, (B, S, H), jnp.float32)
    keys_in = jax.random.normal(kk, (B, S, H), jnp.float32)
    values_in = jax.random.normal(kv, (B, S, H), jnp.float32)

    # Cross-attention path (separate q/k/v projections).
    out_cross = jax.block_until_ready(
        multi_headed_attention(params, queries, keys_in, values_in, NUM_HEADS))
    ref_cross = _ref_forward(params, queries, keys_in, values_in, NUM_HEADS)
    assert jnp.allclose(out_cross, ref_cross, atol=1e-5, rtol=1e-5), "cross-attn mismatch"

    # Self-attention path (fused QKV projection kernel).
    out_self = jax.block_until_ready(
        multi_headed_attention(params, queries, queries, queries, NUM_HEADS))
    ref_self = _ref_forward(params, queries, queries, queries, NUM_HEADS)
    assert jnp.allclose(out_self, ref_self, atol=1e-5, rtol=1e-5), "self-attn mismatch"

    print("KERNEL_OK")
</pallas_src>

<mosaic_0001>
module attributes {stable_mosaic.version = 11 : i64} {
  func.func @_linear_kernel(%arg0: i32, %arg1: i32, %arg2: i32, %arg3: memref<16x32xf32, #tpu.memory_space<vmem>>, %arg4: memref<32x32xf32, #tpu.memory_space<vmem>>, %arg5: memref<1x32xf32, #tpu.memory_space<vmem>>, %arg6: memref<16x32xf32, #tpu.memory_space<vmem>>, %arg7: memref<16x32xf32, #tpu.memory_space<vmem>>) attributes {dimension_semantics = [#tpu.dimension_semantics<parallel>, #tpu.dimension_semantics<parallel>, #tpu.dimension_semantics<arbitrary>], iteration_bounds = array<i64: 1, 1, 1>, scalar_prefetch = 0 : i64, scratch_operands = 1 : i64, tpu.core_type = #tpu.core_type<tc>, window_params = [{transform_indices = @transform_0, window_bounds = array<i64: 16, 32>}, {transform_indices = @transform_1, window_bounds = array<i64: 32, 32>}, {transform_indices = @transform_2, window_bounds = array<i64: 1, 32>}, {transform_indices = @transform_3, window_bounds = array<i64: 16, 32>}]} {
    %c0_i32 = arith.constant 0 : i32
    %0 = arith.cmpi eq, %arg2, %c0_i32 : i32
    %1 = arith.extui %0 : i1 to i32
    %c0_i32_0 = arith.constant 0 : i32
    %2 = arith.cmpi ne, %1, %c0_i32_0 : i32
    scf.if %2 {
      %cst_10 = arith.constant 0.000000e+00 : f32
      %12 = vector.broadcast %cst_10 : f32 to vector<16x32xf32>
      %c0_11 = arith.constant 0 : index
      %c0_12 = arith.constant 0 : index
      %13 = vector.load %arg7[%c0_11, %c0_12] : memref<16x32xf32, #tpu.memory_space<vmem>>, vector<16x32xf32>
      tpu.vector_store %arg7[%c0_11, %c0_12], %12 {strides = array<i32>} : memref<16x32xf32, #tpu.memory_space<vmem>>, vector<16x32xf32>,
    } else {
    }
    %c0 = arith.constant 0 : index
    %c0_1 = arith.constant 0 : index
    %3 = vector.load %arg7[%c0, %c0_1] : memref<16x32xf32, #tpu.memory_space<vmem>>, vector<16x32xf32>
    %c0_2 = arith.constant 0 : index
    %c0_3 = arith.constant 0 : index
    %4 = vector.load %arg3[%c0_2, %c0_3] : memref<16x32xf32, #tpu.memory_space<vmem>>, vector<16x32xf32>
    %c0_4 = arith.constant 0 : index
    %c0_5 = arith.constant 0 : index
    %5 = vector.load %arg4[%c0_4, %c0_5] : memref<32x32xf32, #tpu.memory_space<vmem>>, vector<32x32xf32>
    %cst = arith.constant dense<0.000000e+00> : vector<16x32xf32>
    %6 = tpu.matmul %4, %5, %cst {dimension_numbers = #tpu.dot_dimension_numbers<[1], [1], [0], [0], [0, 0, 1, 0], [], []>} : vector<16x32xf32>, vector<32x32xf32>, vector<16x32xf32> -> vector<16x32xf32>
    %7 = arith.addf %3, %6 : vector<16x32xf32>
    %c0_6 = arith.constant 0 : index
    %c0_7 = arith.constant 0 : index
    %8 = vector.load %arg7[%c0_6, %c0_7] : memref<16x32xf32, #tpu.memory_space<vmem>>, vector<16x32xf32>
    tpu.vector_store %arg7[%c0_6, %c0_7], %7 {strides = array<i32>} : memref<16x32xf32, #tpu.memory_space<vmem>>, vector<16x32xf32>,
    %c0_i32_8 = arith.constant 0 : i32
    %9 = arith.cmpi eq, %arg2, %c0_i32_8 : i32
    %10 = arith.extui %9 : i1 to i32
    %c0_i32_9 = arith.constant 0 : i32
    %11 = arith.cmpi ne, %10, %c0_i32_9 : i32
    scf.if %11 {
      %c0_10 = arith.constant 0 : index
      %c0_11 = arith.constant 0 : index
      %12 = vector.load %arg7[%c0_10, %c0_11] : memref<16x32xf32, #tpu.memory_space<vmem>>, vector<16x32xf32>
      %c0_12 = arith.constant 0 : index
      %c0_13 = arith.constant 0 : index
      %13 = vector.load %arg5[%c0_12, %c0_13] : memref<1x32xf32, #tpu.memory_space<vmem>>, vector<1x32xf32>
      %14 = vector.broadcast %13 : vector<1x32xf32> to vector<16x32xf32>
      %15 = arith.addf %12, %14 : vector<16x32xf32>
      %c0_14 = arith.constant 0 : index
      %c0_15 = arith.constant 0 : index
      %16 = vector.load %arg6[%c0_14, %c0_15] : memref<16x32xf32, #tpu.memory_space<vmem>>, vector<16x32xf32>
      tpu.vector_store %arg6[%c0_14, %c0_15], %15 {strides = array<i32>} : memref<16x32xf32, #tpu.memory_space<vmem>>, vector<16x32xf32>,
    } else {
    }
    return
  }
  func.func @transform_0(%arg0: i32, %arg1: i32, %arg2: i32) -> (i32, i32) {
    %c0_i32 = arith.constant 0 : i32
    return %arg0, %arg2 : i32, i32
  }
  func.func @transform_1(%arg0: i32, %arg1: i32, %arg2: i32) -> (i32, i32) {
    %c0_i32 = arith.constant 0 : i32
    return %arg1, %arg2 : i32, i32
  }
  func.func @transform_2(%arg0: i32, %arg1: i32, %arg2: i32) -> (i32, i32) {
    %c0_i32 = arith.constant 0 : i32
    %c0_i32_0 = arith.constant 0 : i32
    return %c0_i32, %arg1 : i32, i32
  }
  func.func @transform_3(%arg0: i32, %arg1: i32, %arg2: i32) -> (i32, i32) {
    %c0_i32 = arith.constant 0 : i32
    return %arg0, %arg1 : i32, i32
  }
}

</mosaic_0001>

<llo_original>
// kernel: tpu_custom_call.1
$region0: #{tpu_custom_call.1}
  #allocation0 [shape = 'u32[]', space=smem, size = 0x4, offset = 0x4, fixed_abs, tag = 'smem constant byte address 0x4 - core index']
  #allocation1 [shape = 'u32[72,128]{1,0:T(1,128)}', space=vmem, size = 0x9000, scoped, tag = 'internal scratch']
  #allocation2 [shape = 'f32[16,32]{1,0:T(8,128)}', space=vmem, size = 0x2000, scoped, tag = 'scratch operand']
  %s0 = inlined_call_operand.hbm [shape: f32[16,32], index: 0, kind: input, shape index: {}]
  %s1 = inlined_call_operand.hbm [shape: f32[32,32], index: 1, kind: input, shape index: {}]
  %s2 = inlined_call_operand.vmem [shape: f32[1,32], index: 2, kind: input, shape index: {}]
  %s3 = inlined_call_operand.hbm [shape: f32[16,32], index: 3, kind: output, shape index: {}]
  %s4 = sld [smem:[#allocation0]]
  $region38: #{tpu_custom_call.1} parent=0
    _
  %s6 = ssub.s32 1, %s4
  %s7 = scalar_select 0, %s6, %s4
  $region1: #{tpu_custom_call.1} parent=0
    #allocation3 [shape = 'u8[8192]{0}', space=vmem, size = 0x2000, scoped, tag = 'input window, operand 0, single buffered']
    #allocation4 [shape = 's32[1]{0}', space=sflag, size = 0x4, scoped, tag = 'scoped memory for tpu_custom_call.1']
    #allocation5 [shape = 's32[1]{0}', space=sflag, size = 0x4, scoped, tag = 'scoped memory for tpu_custom_call.1']
    #allocation6 [shape = 'u8[16384]{0}', space=vmem, size = 0x4000, scoped, tag = 'input window, operand 1, single buffered']
    #allocation7 [shape = 's32[1]{0}', space=sflag, size = 0x4, scoped, tag = 'scoped memory for tpu_custom_call.1']
    #allocation8 [shape = 'u8[8192]{0}', space=vmem, size = 0x2000, scoped, tag = 'output window, operand 0, single buffered']
    %8 = vsyncpa [#allocation4], 0
    %9 = vsyncpa [#allocation7], 0
    %10 = vsyncpa [#allocation5], 0
    // Predicated region
    $region2: #{tpu_custom_call.1} parent=1 // pred_check
      _
    $region3: #{tpu_custom_call.1} parent=1 // pred_check_branch
      %12 = sbr.rel (0) target = $region5
    $region4: #{tpu_custom_call.1} parent=1 // pred_region
      %14 = vsyncadd [#allocation4], 0
      %s15 = sshll.u32 %s0, 4
      %s16 = int_to_ptr.hbm [resolvable:$true] %s15
      %s17 = sshll.u32 [#allocation3], 4
      %s18 = int_to_ptr.vmem [resolvable:$true] %s17
      %23 = dma.hbm_to_vmem [thread:$0]  %s16, 256, %s18, [#allocation4], 128, 128, 8
    $region5: #{tpu_custom_call.1} parent=1 // pred_fallthru
      _
    // Predicated region
    $region6: #{tpu_custom_call.1} parent=1 // pred_check
      _
    $region7: #{tpu_custom_call.1} parent=1 // pred_check_branch
      %25 = sbr.rel (0) target = $region9
    $region8: #{tpu_custom_call.1} parent=1 // pred_region
      %27 = vsyncadd [#allocation7], 0
      %s28 = sshll.u32 %s1, 4
      %s29 = int_to_ptr.hbm [resolvable:$true] %s28
      %s30 = sshll.u32 [#allocation6], 4
      %s31 = int_to_ptr.vmem [resolvable:$true] %s30
      %36 = dma.hbm_to_vmem [thread:$0]  %s29, 512, %s31, [#allocation7], 128, 128, 8
    $region9: #{tpu_custom_call.1} parent=1 // pred_fallthru
      _
    // Predicated region
    $region10: #{tpu_custom_call.1} parent=1 // pred_check
      _
    $region11: #{tpu_custom_call.1} parent=1 // pred_check_branch
      %38 = sbr.rel (0) target = $region13
    $region12: #{tpu_custom_call.1} parent=1 // pred_region
      _
    $region13: #{tpu_custom_call.1} parent=1 // pred_fallthru
      _
    // Predicated region
    $region14: #{tpu_custom_call.1} parent=1 // pred_check
      _
    $region15: #{tpu_custom_call.1} parent=1 // pred_check_branch
      %40 = sbr.rel (0) target = $region17
    $region16: #{tpu_custom_call.1} parent=1 // pred_region
      %42 = dma.done [#allocation4], 256
    $region17: #{tpu_custom_call.1} parent=1 // pred_fallthru
      _
    // Predicated region
    $region18: #{tpu_custom_call.1} parent=1 // pred_check
      _
    $region19: #{tpu_custom_call.1} parent=1 // pred_check_branch
      %44 = sbr.rel (0) target = $region21
    $region20: #{tpu_custom_call.1} parent=1 // pred_region
      %46 = dma.done [#allocation7], 512
    $region21: #{tpu_custom_call.1} parent=1 // pred_fallthru
      _
    %p47 = scmp.eq.s32.totalorder 0, 0
    // Predicated region
    $region22: #{tpu_custom_call.1} parent=1 // pred_check
      %p48 = pneg %p47
    $region23: #{tpu_custom_call.1} parent=1 // pred_check_branch
      %50 = sbr.rel (%p48) target = $region25
    $region24: #{tpu_custom_call.1} parent=1 // pred_region
      %vm51 = vcmask 261120
      %52 = vst.msk [vmem:[#allocation2] sm:$0xff] %vm51, 0.0
      %53 = vst.msk [vmem:[#allocation2 + $0x8] sm:$0xff] %vm51, 0.0
    $region25: #{tpu_custom_call.1} parent=1 // pred_fallthru
      _
    %v54 = vld [vmem:[#allocation2] sm:$0xff]
    %v55 = vld [vmem:[#allocation2 + $0x8] sm:$0xff]
    %v56 = vld [vmem:[#allocation3] sm:$0xff]
    %v57 = vld [vmem:[#allocation3 + $0x8] sm:$0xff]
    %v58 = vld [vmem:[#allocation6] sm:$0xff]
    %v59 = vld [vmem:[#allocation6 + $0x8] sm:$0xff]
    %v60 = vld [vmem:[#allocation6 + $0x10] sm:$0xff]
    %v61 = vld [vmem:[#allocation6 + $0x18] sm:$0xff]
    %vm62 = vcmask 261120
    %v64 = vsel %vm62, %v56, 0
    %v67 = vsel %vm62, %v57, 0
    %v70 = vsel %vm62, %v58, 0
    %v73 = vsel %vm62, %v59, 0
    %v76 = vsel %vm62, %v60, 0
    %v79 = vsel %vm62, %v61, 0
    %81 = vmatpush.xpose.msra.mxu0 0.0
    %82 = vmatpush.xpose.msra.mxu0 0.0
    %83 = vmatpush.xpose.msra.mxu0 0.0
    %84 = vmatpush.xpose.msra.mxu0 0.0
    %85 = vmatpush.xpose.msra.mxu0 0.0
    %86 = vmatpush.xpose.msra.mxu0 0.0
    %87 = vmatpush.xpose.msra.mxu0 0.0
    %88 = vmatpush.xpose.msra.mxu0 0.0
    %89 = vmatpush.xpose.msra.mxu0 0.0
    %90 = vmatpush.xpose.msra.mxu0 0.0
    %91 = vmatpush.xpose.msra.mxu0 0.0
    %92 = vmatpush.xpose.msra.mxu0 0.0
    %93 = vmatpush.xpose.msra.mxu0 %v79
    %94 = vmatpush.xpose.msra.mxu0 %v76
    %95 = vmatpush.xpose.msra.mxu0 %v73
    %96 = vmatpush.xpose.msra.mxu0 %v70
    %97 = vmatmul.f32.gmra.mxu0 %v64
    %v98 = vpop.f32.mrf.mxu0
    %v99 = vadd.f32 0.0, %v98
    %100 = vmatmul.f32.gmra.mxu0 %v67
    %v101 = vpop.f32.mrf.mxu0
    %v102 = vadd.f32 0.0, %v101
    %103 = vdwg.mxu0
    %v104 = vadd.f32 %v54, %v99
    %v105 = vadd.f32 %v55, %v102
    %106 = vst.msk [vmem:[#allocation2] sm:$0xff] %vm62, %v104
    %107 = vst.msk [vmem:[#allocation2 + $0x8] sm:$0xff] %vm62, %v105
    // Predicated region
    $region26: #{tpu_custom_call.1} parent=1 // pred_check
      %p108 = pneg %p47
    $region27: #{tpu_custom_call.1} parent=1 // pred_check_branch
      %110 = sbr.rel (%p108) target = $region29
    $region28: #{tpu_custom_call.1} parent=1 // pred_region
      %v111 = vld [vmem:[#allocation2] sm:$0xff]
      %v112 = vld [vmem:[#allocation2 + $0x8] sm:$0xff]
      %v113 = vld [vmem:[%s2] sm:$0x1]
      %v115 = vperm.slane %v113, 0
      %v117 = vadd.f32 %v111, %v115
      %v118 = vadd.f32 %v112, %v115
      %119 = vst.msk [vmem:[#allocation8] sm:$0xff] %vm62, %v117
      %120 = vst.msk [vmem:[#allocation8 + $0x8] sm:$0xff] %vm62, %v118
    $region29: #{tpu_custom_call.1} parent=1 // pred_fallthru
      _
    // Predicated region
    $region30: #{tpu_custom_call.1} parent=1 // pred_check
      _
    $region31: #{tpu_custom_call.1} parent=1 // pred_check_branch
      %122 = sbr.rel (0) target = $region33
    $region32: #{tpu_custom_call.1} parent=1 // pred_region
      %124 = vsyncadd [#allocation5], 0
      %s125 = sshll.u32 [#allocation8], 4
      %s126 = int_to_ptr.vmem [resolvable:$true] %s125
      %s127 = sshll.u32 %s3, 4
      %s128 = int_to_ptr.hbm [resolvable:$true] %s127
      %133 = dma.vmem_to_hbm [thread:$0]  %s126, 256, %s128, [#allocation5], 128, 128, 8
    $region33: #{tpu_custom_call.1} parent=1 // pred_fallthru
      _
    // Predicated region
    $region34: #{tpu_custom_call.1} parent=1 // pred_check
      _
    $region35: #{tpu_custom_call.1} parent=1 // pred_check_branch
      %135 = sbr.rel (0) target = $region37
    $region36: #{tpu_custom_call.1} parent=1 // pred_region
      %137 = dma.done [#allocation5], 256
    $region37: #{tpu_custom_call.1} parent=1 // pred_fallthru
      _
    %138 = vsyncpa [#allocation4], 1
    %139 = vsyncpa [#allocation7], 1
    %140 = vsyncpa [#allocation5], 1

</llo_original>
